<compile_context>
chip_gen: v5e
topology: v5e:2x2
jax: 0.10.0
libtpu: 0.0.40
codegen_flags: <defaults>
</compile_context>

<pallas_src>
import functools
import math

import jax
import jax.numpy as jnp
from jax.experimental import pallas as pl
from jax.experimental.pallas import tpu as pltpu


# --------------------------------------------------------------------------
# Tiling / budget constants
# --------------------------------------------------------------------------
COMPUTE_DTYPE = jnp.bfloat16          # MXU inputs; accumulation stays f32.
TM, TN, TK = 512, 512, 512            # 1x1-conv (matmul) tile targets
ACC_ROWS_TARGET = 512                 # conv3x3: target rows of the f32 acc tile


def _round_up(v, m):
    return (v + m - 1) // m * m


def _largest_divisor_leq(n, cap, multiple=1):
    for d in range(min(n, cap), 0, -1):
        if n % d == 0 and d % multiple == 0:
            return d
    return None


def _tile_and_pad(dim, target, multiple):
    """Pick a tile for `dim`: full dim if small, else a divisor (no padding);
    fall back to padding only if no suitable divisor exists."""
    if dim <= target:
        return dim, dim
    d = _largest_divisor_leq(dim, target, multiple)
    if d is not None:
        return d, dim
    return target, _round_up(dim, target)


def _channel_tile(c):
    for t in (256, 128):
        if c % t == 0:
            return t
    return c


def _default_vmem_limit():
    cap = 64 * 1024 * 1024
    try:
        info = pltpu.get_tpu_info()
        cap = int(getattr(info, "vmem_capacity_bytes", cap)) or cap
    except Exception:
        pass
    # ~3/4 of physical VMEM: 96 MiB on v5e/v6e (128 MiB), 48 MiB on v7x (64 MiB).
    return min(cap * 3 // 4, 96 * 1024 * 1024)


VMEM_LIMIT_BYTES = _default_vmem_limit()


# --------------------------------------------------------------------------
# Pallas kernels: tiled matmul + bias (+ residual / fused downsample) (+ ReLU)
# --------------------------------------------------------------------------
def _mm_kernel(x_ref, w_ref, b_ref, o_ref, acc_ref, *, relu):
    @pl.when(pl.program_id(2) == 0)
    def _():
        acc_ref[...] = jnp.zeros_like(acc_ref)

    acc_ref[...] += jnp.dot(x_ref[...], w_ref[...],
                            preferred_element_type=jnp.float32)

    @pl.when(pl.program_id(2) == pl.num_programs(2) - 1)
    def _():
        out = acc_ref[...] + b_ref[...]
        if relu:
            out = jnp.maximum(out, 0.0)
        o_ref[...] = out.astype(o_ref.dtype)


def _mm_res_kernel(x_ref, w_ref, b_ref, r_ref, o_ref, acc_ref, *, relu):
    @pl.when(pl.program_id(2) == 0)
    def _():
        acc_ref[...] = jnp.zeros_like(acc_ref)

    acc_ref[...] += jnp.dot(x_ref[...], w_ref[...],
                            preferred_element_type=jnp.float32)

    @pl.when(pl.program_id(2) == pl.num_programs(2) - 1)
    def _():
        out = acc_ref[...] + b_ref[...] + r_ref[...].astype(jnp.float32)
        if relu:
            out = jnp.maximum(out, 0.0)
        o_ref[...] = out.astype(o_ref.dtype)


def _mm_ds_kernel(x_ref, w_ref, b_ref, xd_ref, wd_ref, bd_ref, o_ref, acc_ref,
                  *, relu):
    """Final bottleneck matmul with the downsample 1x1 conv fused in as a
    second accumulation on the same (i, j) output tile."""
    @pl.when(pl.program_id(2) == 0)
    def _():
        acc_ref[...] = jnp.zeros_like(acc_ref)

    acc_ref[...] += jnp.dot(x_ref[...], w_ref[...],
                            preferred_element_type=jnp.float32)

    @pl.when(pl.program_id(2) == pl.num_programs(2) - 1)
    def _():
        out = (acc_ref[...] + b_ref[...] + bd_ref[...]
               + jnp.dot(xd_ref[...], wd_ref[...],
                         preferred_element_type=jnp.float32))
        if relu:
            out = jnp.maximum(out, 0.0)
        o_ref[...] = out.astype(o_ref.dtype)


def matmul_fused(x, w, b, *, relu, residual=None, ds=None):
    """y = act(x @ w + b [+ residual] [+ x_ds @ w_ds + b_ds]).

    x:(M,K), w:(K,N), b:(N,) f32; residual:(M,N); ds=(x_ds:(M,K2), w_ds, b_ds).
    """
    assert not (residual is not None and ds is not None)
    M, K = x.shape
    N = w.shape[1]

    tm, Mp = _tile_and_pad(M, TM, 8)
    tn, Np = _tile_and_pad(N, TN, 128)
    tk, Kp = _tile_and_pad(K, TK, 128)

    x = x.astype(COMPUTE_DTYPE)
    w = w.astype(COMPUTE_DTYPE)
    if (Mp, Kp) != (M, K):
        x = jnp.pad(x, ((0, Mp - M), (0, Kp - K)))
    if (Kp, Np) != (K, N):
        w = jnp.pad(w, ((0, Kp - K), (0, Np - N)))
    bias = b.astype(jnp.float32).reshape(1, N)
    if Np != N:
        bias = jnp.pad(bias, ((0, 0), (0, Np - N)))

    in_specs = [
        pl.BlockSpec((tm, tk), lambda i, j, k: (i, k)),
        pl.BlockSpec((tk, tn), lambda i, j, k: (k, j)),
        pl.BlockSpec((1, tn), lambda i, j, k: (0, j)),
    ]
    args = [x, w, bias]

    if ds is not None:
        xd, wd, bd = ds
        K2 = xd.shape[1]
        xd = xd.astype(COMPUTE_DTYPE)
        wd = wd.astype(COMPUTE_DTYPE)
        bd2 = bd.astype(jnp.float32).reshape(1, N)
        if Mp != M:
            xd = jnp.pad(xd, ((0, Mp - M), (0, 0)))
        if Np != N:
            wd = jnp.pad(wd, ((0, 0), (0, Np - N)))
            bd2 = jnp.pad(bd2, ((0, 0), (0, Np - N)))
        in_specs += [
            pl.BlockSpec((tm, K2), lambda i, j, k: (i, 0)),
            pl.BlockSpec((K2, tn), lambda i, j, k: (0, j)),
            pl.BlockSpec((1, tn), lambda i, j, k: (0, j)),
        ]
        args += [xd, wd, bd2]
        kernel = functools.partial(_mm_ds_kernel, relu=relu)
    elif residual is not None:
        r = residual.astype(COMPUTE_DTYPE)
        if (Mp, Np) != r.shape:
            r = jnp.pad(r, ((0, Mp - r.shape[0]), (0, Np - r.shape[1])))
        in_specs.append(pl.BlockSpec((tm, tn), lambda i, j, k: (i, j)))
        args.append(r)
        kernel = functools.partial(_mm_res_kernel, relu=relu)
    else:
        kernel = functools.partial(_mm_kernel, relu=relu)

    y = pl.pallas_call(
        kernel,
        out_shape=jax.ShapeDtypeStruct((Mp, Np), COMPUTE_DTYPE),
        grid_spec=pltpu.PrefetchScalarGridSpec(
            num_scalar_prefetch=0,
            grid=(Mp // tm, Np // tn, Kp // tk),
            in_specs=in_specs,
            out_specs=pl.BlockSpec((tm, tn), lambda i, j, k: (i, j)),
            scratch_shapes=[pltpu.VMEM((tm, tn), jnp.float32)],
        ),
        compiler_params=pltpu.CompilerParams(
            dimension_semantics=("parallel", "parallel", "arbitrary"),
            vmem_limit_bytes=VMEM_LIMIT_BYTES,
        ),
    )(*args)
    if (Mp, Np) != (M, N):
        y = y[:M, :N]
    return y


# --------------------------------------------------------------------------
# Fused 3x3 conv kernel: tiled over (batch, row-tiles, cout-tiles)
# --------------------------------------------------------------------------
def _conv3x3_kernel(x_ref, w_ref, b_ref, o_ref, acc_ref, *, s, tho, wo, wq,
                    relu):
    # x_ref: (1, s*s, l_in, cin)  flattened stride-phase rows (8-aligned stride)
    # w_ref: (9, cin, tcout); b_ref: (1, tcout) f32
    # o_ref: (1, tho, wo, tcout); acc_ref: (tho*wq, tcout) f32 VMEM scratch
    m = tho * wq
    acc_ref[...] = jnp.zeros_like(acc_ref)
    for dh in range(3):
        for dw in range(3):
            p = (dh % s) * s + (dw % s)           # stride phase of this tap
            off = (dh // s) * wq + (dw // s)      # flattened row offset
            win = x_ref[0, p, off:off + m, :]      # contiguous (m, cin) slice
            acc_ref[...] += jnp.dot(win, w_ref[dh * 3 + dw],
                                    preferred_element_type=jnp.float32)
    out = acc_ref[...] + b_ref[...]
    if relu:
        out = jnp.maximum(out, 0.0)
    tcout = o_ref.shape[-1]
    out = out.reshape(tho, wq, tcout)[:, :wo, :]   # wq % 8 == 0 -> free reshape
    o_ref[...] = out[None].astype(o_ref.dtype)


def conv3x3(x, w, b, stride=1, relu=True):
    """3x3 conv, padding=1, NHWC.  w:(3,3,Cin,Cout).  No im2col in HBM."""
    n, h, wd, c = x.shape
    s = stride
    cout = w.shape[-1]
    ho = (h + 2 - 3) // s + 1
    wo = (wd + 2 - 3) // s + 1
    rh = 2 // s                      # extra halo rows per stride phase
    rw = 2 // s                      # extra halo cols per stride phase
    hq = ho + rh
    wq = _round_up(wo + rw, 8)       # 8-aligned flattened row stride

    tho = _largest_divisor_leq(ho, max(1, ACC_ROWS_TARGET // wq)) or 1
    n_rt = ho // tho
    tcout = _channel_tile(cout)
    n_ct = cout // tcout
    l_in = (tho + rh) * wq + rw

    xpad = jnp.pad(x.astype(COMPUTE_DTYPE), ((0, 0), (1, 1), (1, 1), (0, 0)))
    # Stride-phase decomposition + flatten + overlapping row-tile windows:
    # one wrapper XLA pass of ~(1 + rh/tho)x the conv input, after which every
    # in-kernel tap window is a contiguous 2-D row slice (no reshape/relayout).
    phases = []
    for a in range(s):
        for bb in range(s):
            ph = xpad[:, a::s, bb::s, :][:, :hq, :wq, :]
            ph = jnp.pad(ph, ((0, 0), (0, hq - ph.shape[1]),
                              (0, wq - ph.shape[2]), (0, 0)))
            phases.append(ph)
    xph = jnp.stack(phases, axis=1).reshape(n, s * s, hq * wq, c)
    xph = jnp.pad(xph, ((0, 0), (0, 0), (0, rw), (0, 0)))
    xt = jnp.stack([xph[:, :, t * tho * wq: t * tho * wq + l_in, :]
                    for t in range(n_rt)], axis=1)
    xt = xt.reshape(n * n_rt, s * s, l_in, c)

    w9 = w.astype(COMPUTE_DTYPE).reshape(9, c, cout)
    bias = b.astype(jnp.float32).reshape(1, cout)

    kernel = functools.partial(_conv3x3_kernel, s=s, tho=tho, wo=wo, wq=wq,
                               relu=relu)
    return pl.pallas_call(
        kernel,
        out_shape=jax.ShapeDtypeStruct((n, ho, wo, cout), COMPUTE_DTYPE),
        grid_spec=pltpu.PrefetchScalarGridSpec(
            num_scalar_prefetch=0,
            grid=(n, n_rt, n_ct),
            in_specs=[
                pl.BlockSpec((1, s * s, l_in, c),
                             lambda bi, ti, ji: (bi * n_rt + ti, 0, 0, 0)),
                pl.BlockSpec((9, c, tcout), lambda bi, ti, ji: (0, 0, ji)),
                pl.BlockSpec((1, tcout), lambda bi, ti, ji: (0, ji)),
            ],
            out_specs=pl.BlockSpec((1, tho, wo, tcout),
                                   lambda bi, ti, ji: (bi, ti, 0, ji)),
            scratch_shapes=[pltpu.VMEM((tho * wq, tcout), jnp.float32)],
        ),
        compiler_params=pltpu.CompilerParams(
            dimension_semantics=("parallel", "parallel", "parallel"),
            vmem_limit_bytes=VMEM_LIMIT_BYTES,
        ),
    )(xt, w9, bias)


# --------------------------------------------------------------------------
# 1x1 conv wrapper (flatten spatial -> tiled matmul kernel)
# --------------------------------------------------------------------------
def conv1x1(x, w, b, *, relu=True, residual=None, downsample=None):
    n, h, wd_, c = x.shape
    rf = None
    if residual is not None:
        rf = residual.reshape(-1, residual.shape[-1])
    ds = None
    if downsample is not None:
        xd, wr, br = downsample
        ds = (xd.reshape(-1, xd.shape[-1]), wr, br)
    y = matmul_fused(x.reshape(-1, c), w, b, relu=relu, residual=rf, ds=ds)
    return y.reshape(n, h, wd_, w.shape[1])


# --------------------------------------------------------------------------
# Parameter init + BatchNorm folding (deterministic, synthetic)
# --------------------------------------------------------------------------
def _conv_weight(key, shape):
    fan_in = math.prod(shape[:-1])
    return jax.random.normal(key, shape, jnp.float32) / jnp.sqrt(fan_in)


def _bn_params(key, c):
    k1, k2, k3, k4 = jax.random.split(key, 4)
    gamma = 1.0 + 0.1 * jax.random.normal(k1, (c,), jnp.float32)
    beta = 0.1 * jax.random.normal(k2, (c,), jnp.float32)
    mean = 0.1 * jax.random.normal(k3, (c,), jnp.float32)
    var = jnp.abs(jax.random.normal(k4, (c,), jnp.float32)) + 0.5
    return gamma, beta, mean, var


def _fold_bn(w, bn, eps=1e-5):
    gamma, beta, mean, var = bn
    scale = gamma / jnp.sqrt(var + eps)
    # Weights feed the MXU in bf16; the folded bias stays f32 and is added to
    # the f32 accumulator inside the kernels.
    return (w * scale).astype(COMPUTE_DTYPE), (beta - mean * scale).astype(jnp.float32)


def init_bottleneck(key, inplance, plance, stride, has_reduce):
    ks = jax.random.split(key, 8)
    w1, b1 = _fold_bn(_conv_weight(ks[0], (inplance, plance)), _bn_params(ks[1], plance))
    w2, b2 = _fold_bn(_conv_weight(ks[2], (3, 3, plance, plance)), _bn_params(ks[3], plance))
    w3, b3 = _fold_bn(_conv_weight(ks[4], (plance, plance * 4)), _bn_params(ks[5], plance * 4))
    params = dict(stride=stride, w1=w1, b1=b1, w2=w2, b2=b2, w3=w3, b3=b3,
                  wr=None, br=None)
    if has_reduce:
        wr, br = _fold_bn(_conv_weight(ks[6], (inplance, plance * 4)),
                          _bn_params(ks[7], plance * 4))
        params["wr"], params["br"] = wr, br
    return params


def bottleneck_forward(x, p):
    s = p["stride"]
    out = conv1x1(x, p["w1"], p["b1"], relu=True)
    out = conv3x3(out, p["w2"], p["b2"], stride=s, relu=True)
    if p["wr"] is not None:
        # Downsample 1x1 conv fused into the final matmul kernel as a second
        # accumulation on the same output tile (no identity HBM round-trip).
        xd = x[:, ::s, ::s, :] if s > 1 else x
        # TODO(synk): fold the strided subsample into the kernel index_map to
        # avoid this wrapper-side gather pass.
        return conv1x1(out, p["w3"], p["b3"], relu=True,
                       downsample=(xd, p["wr"], p["br"]))
    # TODO(synk): longer term, fuse conv1 -> conv3x3 -> conv3 per spatial tile
    # in one pallas_call (pltpu.emit_pipeline) so intermediates stay in VMEM.
    return conv1x1(out, p["w3"], p["b3"], relu=True, residual=x)


class PallasBlock:
    """JAX/Pallas equivalent of the PyTorch `Block` module (inference)."""

    def __init__(self, num, inplance, plance, stride=1, padding=1, *, key):
        # padding is fixed at 1 for the 3x3 convs (matches `padding=1` default).
        del padding
        self.block_params = []
        for i in range(num):
            key, sub = jax.random.split(key)
            mode_a = (i == 0)
            s = stride if mode_a else 1
            self.block_params.append(
                init_bottleneck(sub, inplance, plance, s, has_reduce=mode_a)
            )
            inplance = plance * 4

    def __call__(self, x_nchw):
        # layout: accept NCHW (PyTorch convention), compute in NHWC/bf16,
        # return NCHW float32.
        x = jnp.transpose(x_nchw, (0, 2, 3, 1)).astype(COMPUTE_DTYPE)
        for p in self.block_params:
            x = bottleneck_forward(x, p)
        return jnp.transpose(x, (0, 3, 1, 2)).astype(jnp.float32)


if __name__ == "__main__":
    key = jax.random.PRNGKey(0)
    kx, kp = jax.random.split(key)

    # Small shapes: batch=2, in-channels=4, spatial=16x16; plance=4, num=2, stride=2.
    x = jax.random.normal(kx, (2, 4, 16, 16), jnp.float32)  # NCHW
    block = PallasBlock(num=2, inplance=4, plance=4, stride=2, padding=1, key=kp)

    y = jax.block_until_ready(block(x))
    assert y.shape == (2, 16, 8, 8), y.shape  # (N, plance*4, H/stride, W/stride)
    assert bool(jnp.all(jnp.isfinite(y)))
    # TODO(synk): BatchNorm is folded using inference-mode running stats; the
    # training-mode batch-statistics path is not implemented.
    print("KERNEL_OK")
</pallas_src>

<mosaic_0001>
module attributes {stable_mosaic.version = 11 : i64} {
  func.func @_mm_kernel(%arg0: i32, %arg1: i32, %arg2: i32, %arg3: memref<512x4xbf16, #tpu.memory_space<vmem>>, %arg4: memref<4x4xbf16, #tpu.memory_space<vmem>>, %arg5: memref<1x4xf32, #tpu.memory_space<vmem>>, %arg6: memref<512x4xbf16, #tpu.memory_space<vmem>>, %arg7: memref<512x4xf32, #tpu.memory_space<vmem>>) attributes {dimension_semantics = [#tpu.dimension_semantics<parallel>, #tpu.dimension_semantics<parallel>, #tpu.dimension_semantics<arbitrary>], iteration_bounds = array<i64: 1, 1, 1>, scalar_prefetch = 0 : i64, scratch_operands = 1 : i64, tpu.core_type = #tpu.core_type<tc>, window_params = [{transform_indices = @transform_0, window_bounds = array<i64: 512, 4>}, {transform_indices = @transform_1, window_bounds = array<i64: 4, 4>}, {transform_indices = @transform_2, window_bounds = array<i64: 1, 4>}, {transform_indices = @transform_3, window_bounds = array<i64: 512, 4>}]} {
    %c0_i32 = arith.constant 0 : i32
    %0 = arith.cmpi eq, %arg2, %c0_i32 : i32
    %1 = arith.extui %0 : i1 to i32
    %c0_i32_0 = arith.constant 0 : i32
    %2 = arith.cmpi ne, %1, %c0_i32_0 : i32
    scf.if %2 {
      %cst_10 = arith.constant 0.000000e+00 : f32
      %12 = vector.broadcast %cst_10 : f32 to vector<512x4xf32>
      %c0_11 = arith.constant 0 : index
      %c0_12 = arith.constant 0 : index
      %13 = vector.load %arg7[%c0_11, %c0_12] : memref<512x4xf32, #tpu.memory_space<vmem>>, vector<512x4xf32>
      tpu.vector_store %arg7[%c0_11, %c0_12], %12 {strides = array<i32>} : memref<512x4xf32, #tpu.memory_space<vmem>>, vector<512x4xf32>,
    } else {
    }
    %c0 = arith.constant 0 : index
    %c0_1 = arith.constant 0 : index
    %3 = vector.load %arg7[%c0, %c0_1] : memref<512x4xf32, #tpu.memory_space<vmem>>, vector<512x4xf32>
    %c0_2 = arith.constant 0 : index
    %c0_3 = arith.constant 0 : index
    %4 = vector.load %arg3[%c0_2, %c0_3] : memref<512x4xbf16, #tpu.memory_space<vmem>>, vector<512x4xbf16>
    %c0_4 = arith.constant 0 : index
    %c0_5 = arith.constant 0 : index
    %5 = vector.load %arg4[%c0_4, %c0_5] : memref<4x4xbf16, #tpu.memory_space<vmem>>, vector<4x4xbf16>
    %cst = arith.constant dense<0.000000e+00> : vector<512x4xf32>
    %6 = tpu.matmul %4, %5, %cst {dimension_numbers = #tpu.dot_dimension_numbers<[1], [0], [0], [1], [0, 0, 1, 1], [], []>} : vector<512x4xbf16>, vector<4x4xbf16>, vector<512x4xf32> -> vector<512x4xf32>
    %7 = arith.addf %3, %6 : vector<512x4xf32>
    %c0_6 = arith.constant 0 : index
    %c0_7 = arith.constant 0 : index
    %8 = vector.load %arg7[%c0_6, %c0_7] : memref<512x4xf32, #tpu.memory_space<vmem>>, vector<512x4xf32>
    tpu.vector_store %arg7[%c0_6, %c0_7], %7 {strides = array<i32>} : memref<512x4xf32, #tpu.memory_space<vmem>>, vector<512x4xf32>,
    %c0_i32_8 = arith.constant 0 : i32
    %9 = arith.cmpi eq, %arg2, %c0_i32_8 : i32
    %10 = arith.extui %9 : i1 to i32
    %c0_i32_9 = arith.constant 0 : i32
    %11 = arith.cmpi ne, %10, %c0_i32_9 : i32
    scf.if %11 {
      %c0_10 = arith.constant 0 : index
      %c0_11 = arith.constant 0 : index
      %12 = vector.load %arg7[%c0_10, %c0_11] : memref<512x4xf32, #tpu.memory_space<vmem>>, vector<512x4xf32>
      %c0_12 = arith.constant 0 : index
      %c0_13 = arith.constant 0 : index
      %13 = vector.load %arg5[%c0_12, %c0_13] : memref<1x4xf32, #tpu.memory_space<vmem>>, vector<1x4xf32>
      %14 = vector.broadcast %13 : vector<1x4xf32> to vector<512x4xf32>
      %15 = arith.addf %12, %14 : vector<512x4xf32>
      %cst_14 = arith.constant 0.000000e+00 : f32
      %16 = vector.broadcast %cst_14 : f32 to vector<512x4xf32>
      %17 = arith.maximumf %15, %16 : vector<512x4xf32>
      %18 = arith.truncf %17 : vector<512x4xf32> to vector<512x4xbf16>
      %c0_15 = arith.constant 0 : index
      %c0_16 = arith.constant 0 : index
      %19 = vector.load %arg6[%c0_15, %c0_16] : memref<512x4xbf16, #tpu.memory_space<vmem>>, vector<512x4xbf16>
      tpu.vector_store %arg6[%c0_15, %c0_16], %18 {strides = array<i32>} : memref<512x4xbf16, #tpu.memory_space<vmem>>, vector<512x4xbf16>,
    } else {
    }
    return
  }
  func.func @transform_0(%arg0: i32, %arg1: i32, %arg2: i32) -> (i32, i32) {
    %c0_i32 = arith.constant 0 : i32
    return %arg0, %arg2 : i32, i32
  }
  func.func @transform_1(%arg0: i32, %arg1: i32, %arg2: i32) -> (i32, i32) {
    %c0_i32 = arith.constant 0 : i32
    return %arg2, %arg1 : i32, i32
  }
  func.func @transform_2(%arg0: i32, %arg1: i32, %arg2: i32) -> (i32, i32) {
    %c0_i32 = arith.constant 0 : i32
    %c0_i32_0 = arith.constant 0 : i32
    return %c0_i32, %arg1 : i32, i32
  }
  func.func @transform_3(%arg0: i32, %arg1: i32, %arg2: i32) -> (i32, i32) {
    %c0_i32 = arith.constant 0 : i32
    return %arg0, %arg1 : i32, i32
  }
}

</mosaic_0001>

<llo_original>
// kernel: tpu_custom_call.1
$region0: #{tpu_custom_call.1}
  #allocation0 [shape = 'u32[]', space=smem, size = 0x4, offset = 0x4, fixed_abs, tag = 'smem constant byte address 0x4 - core index']
  #allocation1 [shape = 'u32[72,128]{1,0:T(1,128)}', space=vmem, size = 0x9000, scoped, tag = 'internal scratch']
  #allocation2 [shape = 'f32[512,4]{1,0:T(8,128)}', space=vmem, size = 0x40000, scoped, tag = 'scratch operand']
  %s0 = inlined_call_operand.vmem [shape: bf16[512,4], index: 0, kind: input, shape index: {}]
  %s1 = inlined_call_operand.vmem [shape: bf16[4,4], index: 1, kind: input, shape index: {}]
  %s2 = inlined_call_operand.vmem [shape: f32[1,4], index: 2, kind: input, shape index: {}]
  %s3 = inlined_call_operand.vmem [shape: bf16[512,4], index: 3, kind: output, shape index: {}]
  %s4 = sld [smem:[#allocation0]]
  $region30: #{tpu_custom_call.1} parent=0
    _
  %s6 = ssub.s32 1, %s4
  %s7 = scalar_select 0, %s6, %s4
  // Predicated region
  $region2: #{tpu_custom_call.1} parent=0 // pred_check
    _
  $region3: #{tpu_custom_call.1} parent=0 // pred_check_branch
    %9 = sbr.rel (0) target = $region5
  $region4: #{tpu_custom_call.1} parent=0 // pred_region
    _
  $region5: #{tpu_custom_call.1} parent=0 // pred_fallthru
    _
  // Predicated region
  $region6: #{tpu_custom_call.1} parent=0 // pred_check
    _
  $region7: #{tpu_custom_call.1} parent=0 // pred_check_branch
    %11 = sbr.rel (0) target = $region9
  $region8: #{tpu_custom_call.1} parent=0 // pred_region
    _
  $region9: #{tpu_custom_call.1} parent=0 // pred_fallthru
    _
  // Predicated region
  $region10: #{tpu_custom_call.1} parent=0 // pred_check
    _
  $region11: #{tpu_custom_call.1} parent=0 // pred_check_branch
    %13 = sbr.rel (0) target = $region13
  $region12: #{tpu_custom_call.1} parent=0 // pred_region
    _
  $region13: #{tpu_custom_call.1} parent=0 // pred_fallthru
    _
  %p15 = scmp.eq.s32.totalorder 0, 0
  // Predicated region
  $region14: #{tpu_custom_call.1} parent=0 // pred_check
    %p16 = pneg %p15
  $region15: #{tpu_custom_call.1} parent=0 // pred_check_branch
    %18 = sbr.rel (%p16) target = $region17
  $region16: #{tpu_custom_call.1} parent=0 // pred_region
    %vm19 = vcmask 31744
    %20 = vst.msk [vmem:[#allocation2] sm:$0xff] %vm19, 0.0
    %21 = vst.msk [vmem:[#allocation2 + $0x8] sm:$0xff] %vm19, 0.0
    %22 = vst.msk [vmem:[#allocation2 + $0x10] sm:$0xff] %vm19, 0.0
    %23 = vst.msk [vmem:[#allocation2 + $0x18] sm:$0xff] %vm19, 0.0
    %24 = vst.msk [vmem:[#allocation2 + $0x20] sm:$0xff] %vm19, 0.0
    %25 = vst.msk [vmem:[#allocation2 + $0x28] sm:$0xff] %vm19, 0.0
    %26 = vst.msk [vmem:[#allocation2 + $0x30] sm:$0xff] %vm19, 0.0
    %27 = vst.msk [vmem:[#allocation2 + $0x38] sm:$0xff] %vm19, 0.0
    %28 = vst.msk [vmem:[#allocation2 + $0x40] sm:$0xff] %vm19, 0.0
    %29 = vst.msk [vmem:[#allocation2 + $0x48] sm:$0xff] %vm19, 0.0
    %30 = vst.msk [vmem:[#allocation2 + $0x50] sm:$0xff] %vm19, 0.0
    %31 = vst.msk [vmem:[#allocation2 + $0x58] sm:$0xff] %vm19, 0.0
    %32 = vst.msk [vmem:[#allocation2 + $0x60] sm:$0xff] %vm19, 0.0
    %33 = vst.msk [vmem:[#allocation2 + $0x68] sm:$0xff] %vm19, 0.0
    %34 = vst.msk [vmem:[#allocation2 + $0x70] sm:$0xff] %vm19, 0.0
    %35 = vst.msk [vmem:[#allocation2 + $0x78] sm:$0xff] %vm19, 0.0
    %36 = vst.msk [vmem:[#allocation2 + $0x80] sm:$0xff] %vm19, 0.0
    %37 = vst.msk [vmem:[#allocation2 + $0x88] sm:$0xff] %vm19, 0.0
    %38 = vst.msk [vmem:[#allocation2 + $0x90] sm:$0xff] %vm19, 0.0
    %39 = vst.msk [vmem:[#allocation2 + $0x98] sm:$0xff] %vm19, 0.0
    %40 = vst.msk [vmem:[#allocation2 + $0xa0] sm:$0xff] %vm19, 0.0
    %41 = vst.msk [vmem:[#allocation2 + $0xa8] sm:$0xff] %vm19, 0.0
    %42 = vst.msk [vmem:[#allocation2 + $0xb0] sm:$0xff] %vm19, 0.0
    %43 = vst.msk [vmem:[#allocation2 + $0xb8] sm:$0xff] %vm19, 0.0
    %44 = vst.msk [vmem:[#allocation2 + $0xc0] sm:$0xff] %vm19, 0.0
    %45 = vst.msk [vmem:[#allocation2 + $0xc8] sm:$0xff] %vm19, 0.0
    %46 = vst.msk [vmem:[#allocation2 + $0xd0] sm:$0xff] %vm19, 0.0
    %47 = vst.msk [vmem:[#allocation2 + $0xd8] sm:$0xff] %vm19, 0.0
    %48 = vst.msk [vmem:[#allocation2 + $0xe0] sm:$0xff] %vm19, 0.0
    %49 = vst.msk [vmem:[#allocation2 + $0xe8] sm:$0xff] %vm19, 0.0
    %50 = vst.msk [vmem:[#allocation2 + $0xf0] sm:$0xff] %vm19, 0.0
    %51 = vst.msk [vmem:[#allocation2 + $0xf8] sm:$0xff] %vm19, 0.0
    %52 = vst.msk [vmem:[#allocation2 + $0x100] sm:$0xff] %vm19, 0.0
    %53 = vst.msk [vmem:[#allocation2 + $0x108] sm:$0xff] %vm19, 0.0
    %54 = vst.msk [vmem:[#allocation2 + $0x110] sm:$0xff] %vm19, 0.0
    %55 = vst.msk [vmem:[#allocation2 + $0x118] sm:$0xff] %vm19, 0.0
    %56 = vst.msk [vmem:[#allocation2 + $0x120] sm:$0xff] %vm19, 0.0
    %57 = vst.msk [vmem:[#allocation2 + $0x128] sm:$0xff] %vm19, 0.0
    %58 = vst.msk [vmem:[#allocation2 + $0x130] sm:$0xff] %vm19, 0.0
    %59 = vst.msk [vmem:[#allocation2 + $0x138] sm:$0xff] %vm19, 0.0
    %60 = vst.msk [vmem:[#allocation2 + $0x140] sm:$0xff] %vm19, 0.0
    %61 = vst.msk [vmem:[#allocation2 + $0x148] sm:$0xff] %vm19, 0.0
    %62 = vst.msk [vmem:[#allocation2 + $0x150] sm:$0xff] %vm19, 0.0
    %63 = vst.msk [vmem:[#allocation2 + $0x158] sm:$0xff] %vm19, 0.0
    %64 = vst.msk [vmem:[#allocation2 + $0x160] sm:$0xff] %vm19, 0.0
    %65 = vst.msk [vmem:[#allocation2 + $0x168] sm:$0xff] %vm19, 0.0
    %66 = vst.msk [vmem:[#allocation2 + $0x170] sm:$0xff] %vm19, 0.0
    %67 = vst.msk [vmem:[#allocation2 + $0x178] sm:$0xff] %vm19, 0.0
    %68 = vst.msk [vmem:[#allocation2 + $0x180] sm:$0xff] %vm19, 0.0
    %69 = vst.msk [vmem:[#allocation2 + $0x188] sm:$0xff] %vm19, 0.0
    %70 = vst.msk [vmem:[#allocation2 + $0x190] sm:$0xff] %vm19, 0.0
    %71 = vst.msk [vmem:[#allocation2 + $0x198] sm:$0xff] %vm19, 0.0
    %72 = vst.msk [vmem:[#allocation2 + $0x1a0] sm:$0xff] %vm19, 0.0
    %73 = vst.msk [vmem:[#allocation2 + $0x1a8] sm:$0xff] %vm19, 0.0
    %74 = vst.msk [vmem:[#allocation2 + $0x1b0] sm:$0xff] %vm19, 0.0
    %75 = vst.msk [vmem:[#allocation2 + $0x1b8] sm:$0xff] %vm19, 0.0
    %76 = vst.msk [vmem:[#allocation2 + $0x1c0] sm:$0xff] %vm19, 0.0
    %77 = vst.msk [vmem:[#allocation2 + $0x1c8] sm:$0xff] %vm19, 0.0
    %78 = vst.msk [vmem:[#allocation2 + $0x1d0] sm:$0xff] %vm19, 0.0
    %79 = vst.msk [vmem:[#allocation2 + $0x1d8] sm:$0xff] %vm19, 0.0
    %80 = vst.msk [vmem:[#allocation2 + $0x1e0] sm:$0xff] %vm19, 0.0
    %81 = vst.msk [vmem:[#allocation2 + $0x1e8] sm:$0xff] %vm19, 0.0
    %82 = vst.msk [vmem:[#allocation2 + $0x1f0] sm:$0xff] %vm19, 0.0
    %83 = vst.msk [vmem:[#allocation2 + $0x1f8] sm:$0xff] %vm19, 0.0
  $region17: #{tpu_custom_call.1} parent=0 // pred_fallthru
    _
  %v84 = vld [vmem:[#allocation2] sm:$0xff]
  %v85 = vld [vmem:[#allocation2 + $0x8] sm:$0xff]
  %v86 = vld [vmem:[#allocation2 + $0x10] sm:$0xff]
  %v87 = vld [vmem:[#allocation2 + $0x18] sm:$0xff]
  %v88 = vld [vmem:[#allocation2 + $0x20] sm:$0xff]
  %v89 = vld [vmem:[#allocation2 + $0x28] sm:$0xff]
  %v90 = vld [vmem:[#allocation2 + $0x30] sm:$0xff]
  %v91 = vld [vmem:[#allocation2 + $0x38] sm:$0xff]
  %v92 = vld [vmem:[#allocation2 + $0x40] sm:$0xff]
  %v93 = vld [vmem:[#allocation2 + $0x48] sm:$0xff]
  %v94 = vld [vmem:[#allocation2 + $0x50] sm:$0xff]
  %v95 = vld [vmem:[#allocation2 + $0x58] sm:$0xff]
  %v96 = vld [vmem:[#allocation2 + $0x60] sm:$0xff]
  %v97 = vld [vmem:[#allocation2 + $0x68] sm:$0xff]
  %v98 = vld [vmem:[#allocation2 + $0x70] sm:$0xff]
  %v99 = vld [vmem:[#allocation2 + $0x78] sm:$0xff]
  %v100 = vld [vmem:[#allocation2 + $0x80] sm:$0xff]
  %v101 = vld [vmem:[#allocation2 + $0x88] sm:$0xff]
  %v102 = vld [vmem:[#allocation2 + $0x90] sm:$0xff]
  %v103 = vld [vmem:[#allocation2 + $0x98] sm:$0xff]
  %v104 = vld [vmem:[#allocation2 + $0xa0] sm:$0xff]
  %v105 = vld [vmem:[#allocation2 + $0xa8] sm:$0xff]
  %v106 = vld [vmem:[#allocation2 + $0xb0] sm:$0xff]
  %v107 = vld [vmem:[#allocation2 + $0xb8] sm:$0xff]
  %v108 = vld [vmem:[#allocation2 + $0xc0] sm:$0xff]
  %v109 = vld [vmem:[#allocation2 + $0xc8] sm:$0xff]
  %v110 = vld [vmem:[#allocation2 + $0xd0] sm:$0xff]
  %v111 = vld [vmem:[#allocation2 + $0xd8] sm:$0xff]
  %v112 = vld [vmem:[#allocation2 + $0xe0] sm:$0xff]
  %v113 = vld [vmem:[#allocation2 + $0xe8] sm:$0xff]
  %v114 = vld [vmem:[#allocation2 + $0xf0] sm:$0xff]
  %v115 = vld [vmem:[#allocation2 + $0xf8] sm:$0xff]
  %v116 = vld [vmem:[#allocation2 + $0x100] sm:$0xff]
  %v117 = vld [vmem:[#allocation2 + $0x108] sm:$0xff]
  %v118 = vld [vmem:[#allocation2 + $0x110] sm:$0xff]
  %v119 = vld [vmem:[#allocation2 + $0x118] sm:$0xff]
  %v120 = vld [vmem:[#allocation2 + $0x120] sm:$0xff]
  %v121 = vld [vmem:[#allocation2 + $0x128] sm:$0xff]
  %v122 = vld [vmem:[#allocation2 + $0x130] sm:$0xff]
  %v123 = vld [vmem:[#allocation2 + $0x138] sm:$0xff]
  %v124 = vld [vmem:[#allocation2 + $0x140] sm:$0xff]
  %v125 = vld [vmem:[#allocation2 + $0x148] sm:$0xff]
  %v126 = vld [vmem:[#allocation2 + $0x150] sm:$0xff]
  %v127 = vld [vmem:[#allocation2 + $0x158] sm:$0xff]
  %v128 = vld [vmem:[#allocation2 + $0x160] sm:$0xff]
  %v129 = vld [vmem:[#allocation2 + $0x168] sm:$0xff]
  %v130 = vld [vmem:[#allocation2 + $0x170] sm:$0xff]
  %v131 = vld [vmem:[#allocation2 + $0x178] sm:$0xff]
  %v132 = vld [vmem:[#allocation2 + $0x180] sm:$0xff]
  %v133 = vld [vmem:[#allocation2 + $0x188] sm:$0xff]
  %v134 = vld [vmem:[#allocation2 + $0x190] sm:$0xff]
  %v135 = vld [vmem:[#allocation2 + $0x198] sm:$0xff]
  %v136 = vld [vmem:[#allocation2 + $0x1a0] sm:$0xff]
  %v137 = vld [vmem:[#allocation2 + $0x1a8] sm:$0xff]
  %v138 = vld [vmem:[#allocation2 + $0x1b0] sm:$0xff]
  %v139 = vld [vmem:[#allocation2 + $0x1b8] sm:$0xff]
  %v140 = vld [vmem:[#allocation2 + $0x1c0] sm:$0xff]
  %v141 = vld [vmem:[#allocation2 + $0x1c8] sm:$0xff]
  %v142 = vld [vmem:[#allocation2 + $0x1d0] sm:$0xff]
  %v143 = vld [vmem:[#allocation2 + $0x1d8] sm:$0xff]
  %v144 = vld [vmem:[#allocation2 + $0x1e0] sm:$0xff]
  %v145 = vld [vmem:[#allocation2 + $0x1e8] sm:$0xff]
  %v146 = vld [vmem:[#allocation2 + $0x1f0] sm:$0xff]
  %v147 = vld [vmem:[#allocation2 + $0x1f8] sm:$0xff]
  %v148 = vld [vmem:[%s0] sm:$0xf]
  %v149 = vld [vmem:[%s0 + $0x4] sm:$0xf]
  %v150 = vld [vmem:[%s0 + $0x8] sm:$0xf]
  %v151 = vld [vmem:[%s0 + $0xc] sm:$0xf]
  %v152 = vld [vmem:[%s0 + $0x10] sm:$0xf]
  %v153 = vld [vmem:[%s0 + $0x14] sm:$0xf]
  %v154 = vld [vmem:[%s0 + $0x18] sm:$0xf]
  %v155 = vld [vmem:[%s0 + $0x1c] sm:$0xf]
  %v156 = vld [vmem:[%s0 + $0x20] sm:$0xf]
  %v157 = vld [vmem:[%s0 + $0x24] sm:$0xf]
  %v158 = vld [vmem:[%s0 + $0x28] sm:$0xf]
  %v159 = vld [vmem:[%s0 + $0x2c] sm:$0xf]
  %v160 = vld [vmem:[%s0 + $0x30] sm:$0xf]
  %v161 = vld [vmem:[%s0 + $0x34] sm:$0xf]
  %v162 = vld [vmem:[%s0 + $0x38] sm:$0xf]
  %v163 = vld [vmem:[%s0 + $0x3c] sm:$0xf]
  %v164 = vld [vmem:[%s0 + $0x40] sm:$0xf]
  %v165 = vld [vmem:[%s0 + $0x44] sm:$0xf]
  %v166 = vld [vmem:[%s0 + $0x48] sm:$0xf]
  %v167 = vld [vmem:[%s0 + $0x4c] sm:$0xf]
  %v168 = vld [vmem:[%s0 + $0x50] sm:$0xf]
  %v169 = vld [vmem:[%s0 + $0x54] sm:$0xf]
  %v170 = vld [vmem:[%s0 + $0x58] sm:$0xf]
  %v171 = vld [vmem:[%s0 + $0x5c] sm:$0xf]
  %v172 = vld [vmem:[%s0 + $0x60] sm:$0xf]
  %v173 = vld [vmem:[%s0 + $0x64] sm:$0xf]
  %v174 = vld [vmem:[%s0 + $0x68] sm:$0xf]
  %v175 = vld [vmem:[%s0 + $0x6c] sm:$0xf]
  %v176 = vld [vmem:[%s0 + $0x70] sm:$0xf]
  %v177 = vld [vmem:[%s0 + $0x74] sm:$0xf]
  %v178 = vld [vmem:[%s0 + $0x78] sm:$0xf]
  %v179 = vld [vmem:[%s0 + $0x7c] sm:$0xf]
  %v180 = vld [vmem:[%s0 + $0x80] sm:$0xf]
  %v181 = vld [vmem:[%s0 + $0x84] sm:$0xf]
  %v182 = vld [vmem:[%s0 + $0x88] sm:$0xf]
  %v183 = vld [vmem:[%s0 + $0x8c] sm:$0xf]
  %v184 = vld [vmem:[%s0 + $0x90] sm:$0xf]
  %v185 = vld [vmem:[%s0 + $0x94] sm:$0xf]
  %v186 = vld [vmem:[%s0 + $0x98] sm:$0xf]
  %v187 = vld [vmem:[%s0 + $0x9c] sm:$0xf]
  %v188 = vld [vmem:[%s0 + $0xa0] sm:$0xf]
  %v189 = vld [vmem:[%s0 + $0xa4] sm:$0xf]
  %v190 = vld [vmem:[%s0 + $0xa8] sm:$0xf]
  %v191 = vld [vmem:[%s0 + $0xac] sm:$0xf]
  %v192 = vld [vmem:[%s0 + $0xb0] sm:$0xf]
  %v193 = vld [vmem:[%s0 + $0xb4] sm:$0xf]
  %v194 = vld [vmem:[%s0 + $0xb8] sm:$0xf]
  %v195 = vld [vmem:[%s0 + $0xbc] sm:$0xf]
  %v196 = vld [vmem:[%s0 + $0xc0] sm:$0xf]
  %v197 = vld [vmem:[%s0 + $0xc4] sm:$0xf]
  %v198 = vld [vmem:[%s0 + $0xc8] sm:$0xf]
  %v199 = vld [vmem:[%s0 + $0xcc] sm:$0xf]
  %v200 = vld [vmem:[%s0 + $0xd0] sm:$0xf]
  %v201 = vld [vmem:[%s0 + $0xd4] sm:$0xf]
  %v202 = vld [vmem:[%s0 + $0xd8] sm:$0xf]
  %v203 = vld [vmem:[%s0 + $0xdc] sm:$0xf]
  %v204 = vld [vmem:[%s0 + $0xe0] sm:$0xf]
  %v205 = vld [vmem:[%s0 + $0xe4] sm:$0xf]
  %v206 = vld [vmem:[%s0 + $0xe8] sm:$0xf]
  %v207 = vld [vmem:[%s0 + $0xec] sm:$0xf]
  %v208 = vld [vmem:[%s0 + $0xf0] sm:$0xf]
  %v209 = vld [vmem:[%s0 + $0xf4] sm:$0xf]
  %v210 = vld [vmem:[%s0 + $0xf8] sm:$0xf]
  %v211 = vld [vmem:[%s0 + $0xfc] sm:$0xf]
  %v212 = vld [vmem:[%s1] sm:$0x3]
  %v277 = vunpack.c.l.b16 %v148
  %v278 = vunpack.c.l.b16 %v149
  %v279 = vunpack.c.l.b16 %v150
  %v280 = vunpack.c.l.b16 %v151
  %v281 = vunpack.c.l.b16 %v152
  %v282 = vunpack.c.l.b16 %v153
  %v283 = vunpack.c.l.b16 %v154
  %v284 = vunpack.c.l.b16 %v155
  %v285 = vunpack.c.l.b16 %v156
  %v286 = vunpack.c.l.b16 %v157
  %v287 = vunpack.c.l.b16 %v158
  %v288 = vunpack.c.l.b16 %v159
  %v289 = vunpack.c.l.b16 %v160
  %v290 = vunpack.c.l.b16 %v161
  %v291 = vunpack.c.l.b16 %v162
  %v292 = vunpack.c.l.b16 %v163
  %v293 = vunpack.c.l.b16 %v164
  %v294 = vunpack.c.l.b16 %v165
  %v295 = vunpack.c.l.b16 %v166
  %v296 = vunpack.c.l.b16 %v167
  %v297 = vunpack.c.l.b16 %v168
  %v298 = vunpack.c.l.b16 %v169
  %v299 = vunpack.c.l.b16 %v170
  %v300 = vunpack.c.l.b16 %v171
  %v301 = vunpack.c.l.b16 %v172
  %v302 = vunpack.c.l.b16 %v173
  %v303 = vunpack.c.l.b16 %v174
  %v304 = vunpack.c.l.b16 %v175
  %v305 = vunpack.c.l.b16 %v176
  %v306 = vunpack.c.l.b16 %v177
  %v307 = vunpack.c.l.b16 %v178
  %v308 = vunpack.c.l.b16 %v179
  %v309 = vunpack.c.l.b16 %v180
  %v310 = vunpack.c.l.b16 %v181
  %v311 = vunpack.c.l.b16 %v182
  %v312 = vunpack.c.l.b16 %v183
  %v313 = vunpack.c.l.b16 %v184
  %v314 = vunpack.c.l.b16 %v185
  %v315 = vunpack.c.l.b16 %v186
  %v316 = vunpack.c.l.b16 %v187
  %v317 = vunpack.c.l.b16 %v188
  %v318 = vunpack.c.l.b16 %v189
  %v319 = vunpack.c.l.b16 %v190
  %v320 = vunpack.c.l.b16 %v191
  %v321 = vunpack.c.l.b16 %v192
  %v322 = vunpack.c.l.b16 %v193
  %v323 = vunpack.c.l.b16 %v194
  %v324 = vunpack.c.l.b16 %v195
  %v325 = vunpack.c.l.b16 %v196
  %v326 = vunpack.c.l.b16 %v197
  %v327 = vunpack.c.l.b16 %v198
  %v328 = vunpack.c.l.b16 %v199
  %v329 = vunpack.c.l.b16 %v200
  %v330 = vunpack.c.l.b16 %v201
  %v331 = vunpack.c.l.b16 %v202
  %v332 = vunpack.c.l.b16 %v203
  %v333 = vunpack.c.l.b16 %v204
  %v334 = vunpack.c.l.b16 %v205
  %v335 = vunpack.c.l.b16 %v206
  %v336 = vunpack.c.l.b16 %v207
  %v337 = vunpack.c.l.b16 %v208
  %v338 = vunpack.c.l.b16 %v209
  %v339 = vunpack.c.l.b16 %v210
  %v340 = vunpack.c.l.b16 %v211
  %v341 = vpack.c.b16 %v278, %v277
  %v342 = vpack.c.b16 %v280, %v279
  %v343 = vpack.c.b16 %v282, %v281
  %v344 = vpack.c.b16 %v284, %v283
  %v345 = vpack.c.b16 %v286, %v285
  %v346 = vpack.c.b16 %v288, %v287
  %v347 = vpack.c.b16 %v290, %v289
  %v348 = vpack.c.b16 %v292, %v291
  %v349 = vpack.c.b16 %v294, %v293
  %v350 = vpack.c.b16 %v296, %v295
  %v351 = vpack.c.b16 %v298, %v297
  %v352 = vpack.c.b16 %v300, %v299
  %v353 = vpack.c.b16 %v302, %v301
  %v354 = vpack.c.b16 %v304, %v303
  %v355 = vpack.c.b16 %v306, %v305
  %v356 = vpack.c.b16 %v308, %v307
  %v357 = vpack.c.b16 %v310, %v309
  %v358 = vpack.c.b16 %v312, %v311
  %v359 = vpack.c.b16 %v314, %v313
  %v360 = vpack.c.b16 %v316, %v315
  %v361 = vpack.c.b16 %v318, %v317
  %v362 = vpack.c.b16 %v320, %v319
  %v363 = vpack.c.b16 %v322, %v321
  %v364 = vpack.c.b16 %v324, %v323
  %v365 = vpack.c.b16 %v326, %v325
  %v366 = vpack.c.b16 %v328, %v327
  %v367 = vpack.c.b16 %v330, %v329
  %v368 = vpack.c.b16 %v332, %v331
  %v369 = vpack.c.b16 %v334, %v333
  %v370 = vpack.c.b16 %v336, %v335
  %v371 = vpack.c.b16 %v338, %v337
  %v372 = vpack.c.b16 %v340, %v339
  %vm373 = vcmask 31744
  %v375 = vsel %vm373, %v341, 0
  %v378 = vsel %vm373, %v342, 0
  %v381 = vsel %vm373, %v343, 0
  %v384 = vsel %vm373, %v344, 0
  %v387 = vsel %vm373, %v345, 0
  %v390 = vsel %vm373, %v346, 0
  %v393 = vsel %vm373, %v347, 0
  %v396 = vsel %vm373, %v348, 0
  %v399 = vsel %vm373, %v349, 0
  %v402 = vsel %vm373, %v350, 0
  %v405 = vsel %vm373, %v351, 0
  %v408 = vsel %vm373, %v352, 0
  %v411 = vsel %vm373, %v353, 0
  %v414 = vsel %vm373, %v354, 0
  %v417 = vsel %vm373, %v355, 0
  %v420 = vsel %vm373, %v356, 0
  %v423 = vsel %vm373, %v357, 0
  %v426 = vsel %vm373, %v358, 0
  %v429 = vsel %vm373, %v359, 0
  %v432 = vsel %vm373, %v360, 0
  %v435 = vsel %vm373, %v361, 0
  %v438 = vsel %vm373, %v362, 0
  %v441 = vsel %vm373, %v363, 0
  %v444 = vsel %vm373, %v364, 0
  %v447 = vsel %vm373, %v365, 0
  %v450 = vsel %vm373, %v366, 0
  %v453 = vsel %vm373, %v367, 0
  %v456 = vsel %vm373, %v368, 0
  %v459 = vsel %vm373, %v369, 0
  %v462 = vsel %vm373, %v370, 0
  %v465 = vsel %vm373, %v371, 0
  %v468 = vsel %vm373, %v372, 0
  %vm470 = vcmask 1041408
  %v472 = vsel %vm470, %v212, 0
  %474 = vmatpush.bf16.msra.mxu0 0
  %475 = vmatpush.bf16.msra.mxu0 0
  %476 = vmatpush.bf16.msra.mxu0 0
  %477 = vmatpush.bf16.msra.mxu0 0
  %478 = vmatpush.bf16.msra.mxu0 0
  %479 = vmatpush.bf16.msra.mxu0 0
  %480 = vmatpush.bf16.msra.mxu0 0
  %481 = vmatpush.bf16.msra.mxu0 %v472
  %482 = vmatmul.bf16.gmra.mxu0 %v375
  %v483 = vpop.f32.mrf.mxu0
  %v484 = vadd.f32 0.0, %v483
  %v485 = vpop.f32.mrf.mxu0
  %v486 = vadd.f32 0.0, %v485
  %487 = vmatmul.bf16.gmra.mxu0 %v378
  %v488 = vpop.f32.mrf.mxu0
  %v489 = vadd.f32 0.0, %v488
  %v490 = vpop.f32.mrf.mxu0
  %v491 = vadd.f32 0.0, %v490
  %492 = vmatmul.bf16.gmra.mxu0 %v381
  %v493 = vpop.f32.mrf.mxu0
  %v494 = vadd.f32 0.0, %v493
  %v495 = vpop.f32.mrf.mxu0
  %v496 = vadd.f32 0.0, %v495
  %497 = vmatmul.bf16.gmra.mxu0 %v384
  %v498 = vpop.f32.mrf.mxu0
  %v499 = vadd.f32 0.0, %v498
  %v500 = vpop.f32.mrf.mxu0
  %v501 = vadd.f32 0.0, %v500
  %502 = vmatmul.bf16.gmra.mxu0 %v387
  %v503 = vpop.f32.mrf.mxu0
  %v504 = vadd.f32 0.0, %v503
  %v505 = vpop.f32.mrf.mxu0
  %v506 = vadd.f32 0.0, %v505
  %507 = vmatmul.bf16.gmra.mxu0 %v390
  %v508 = vpop.f32.mrf.mxu0
  %v509 = vadd.f32 0.0, %v508
  %v510 = vpop.f32.mrf.mxu0
  %v511 = vadd.f32 0.0, %v510
  %512 = vmatmul.bf16.gmra.mxu0 %v393
  %v513 = vpop.f32.mrf.mxu0
  %v514 = vadd.f32 0.0, %v513
  %v515 = vpop.f32.mrf.mxu0
  %v516 = vadd.f32 0.0, %v515
  %517 = vmatmul.bf16.gmra.mxu0 %v396
  %v518 = vpop.f32.mrf.mxu0
  %v519 = vadd.f32 0.0, %v518
  %v520 = vpop.f32.mrf.mxu0
  %v521 = vadd.f32 0.0, %v520
  %522 = vmatmul.bf16.gmra.mxu0 %v399
  %v523 = vpop.f32.mrf.mxu0
  %v524 = vadd.f32 0.0, %v523
  %v525 = vpop.f32.mrf.mxu0
  %v526 = vadd.f32 0.0, %v525
  %527 = vmatmul.bf16.gmra.mxu0 %v402
  %v528 = vpop.f32.mrf.mxu0
  %v529 = vadd.f32 0.0, %v528
  %v530 = vpop.f32.mrf.mxu0
  %v531 = vadd.f32 0.0, %v530
  %532 = vmatmul.bf16.gmra.mxu0 %v405
  %v533 = vpop.f32.mrf.mxu0
  %v534 = vadd.f32 0.0, %v533
  %v535 = vpop.f32.mrf.mxu0
  %v536 = vadd.f32 0.0, %v535
  %537 = vmatmul.bf16.gmra.mxu0 %v408
  %v538 = vpop.f32.mrf.mxu0
  %v539 = vadd.f32 0.0, %v538
  %v540 = vpop.f32.mrf.mxu0
  %v541 = vadd.f32 0.0, %v540
  %542 = vmatmul.bf16.gmra.mxu0 %v411
  %v543 = vpop.f32.mrf.mxu0
  %v544 = vadd.f32 0.0, %v543
  %v545 = vpop.f32.mrf.mxu0
  %v546 = vadd.f32 0.0, %v545
  %547 = vmatmul.bf16.gmra.mxu0 %v414
  %v548 = vpop.f32.mrf.mxu0
  %v549 = vadd.f32 0.0, %v548
  %v550 = vpop.f32.mrf.mxu0
  %v551 = vadd.f32 0.0, %v550
  %552 = vmatmul.bf16.gmra.mxu0 %v417
  %v553 = vpop.f32.mrf.mxu0
  %v554 = vadd.f32 0.0, %v553
  %v555 = vpop.f32.mrf.mxu0
  %v556 = vadd.f32 0.0, %v555
  %557 = vmatmul.bf16.gmra.mxu0 %v420
  %v558 = vpop.f32.mrf.mxu0
  %v559 = vadd.f32 0.0, %v558
  %v560 = vpop.f32.mrf.mxu0
  %v561 = vadd.f32 0.0, %v560
  %562 = vmatmul.bf16.gmra.mxu0 %v423
  %v563 = vpop.f32.mrf.mxu0
  %v564 = vadd.f32 0.0, %v563
  %v565 = vpop.f32.mrf.mxu0
  %v566 = vadd.f32 0.0, %v565
  %567 = vmatmul.bf16.gmra.mxu0 %v426
  %v568 = vpop.f32.mrf.mxu0
  %v569 = vadd.f32 0.0, %v568
  %v570 = vpop.f32.mrf.mxu0
  %v571 = vadd.f32 0.0, %v570
  %572 = vmatmul.bf16.gmra.mxu0 %v429
  %v573 = vpop.f32.mrf.mxu0
  %v574 = vadd.f32 0.0, %v573
  %v575 = vpop.f32.mrf.mxu0
  %v576 = vadd.f32 0.0, %v575
  %577 = vmatmul.bf16.gmra.mxu0 %v432
  %v578 = vpop.f32.mrf.mxu0
  %v579 = vadd.f32 0.0, %v578
  %v580 = vpop.f32.mrf.mxu0
  %v581 = vadd.f32 0.0, %v580
  %582 = vmatmul.bf16.gmra.mxu0 %v435
  %v583 = vpop.f32.mrf.mxu0
  %v584 = vadd.f32 0.0, %v583
  %v585 = vpop.f32.mrf.mxu0
  %v586 = vadd.f32 0.0, %v585
  %587 = vmatmul.bf16.gmra.mxu0 %v438
  %v588 = vpop.f32.mrf.mxu0
  %v589 = vadd.f32 0.0, %v588
  %v590 = vpop.f32.mrf.mxu0
  %v591 = vadd.f32 0.0, %v590
  %592 = vmatmul.bf16.gmra.mxu0 %v441
  %v593 = vpop.f32.mrf.mxu0
  %v594 = vadd.f32 0.0, %v593
  %v595 = vpop.f32.mrf.mxu0
  %v596 = vadd.f32 0.0, %v595
  %597 = vmatmul.bf16.gmra.mxu0 %v444
  %v598 = vpop.f32.mrf.mxu0
  %v599 = vadd.f32 0.0, %v598
  %v600 = vpop.f32.mrf.mxu0
  %v601 = vadd.f32 0.0, %v600
  %602 = vmatmul.bf16.gmra.mxu0 %v447
  %v603 = vpop.f32.mrf.mxu0
  %v604 = vadd.f32 0.0, %v603
  %v605 = vpop.f32.mrf.mxu0
  %v606 = vadd.f32 0.0, %v605
  %607 = vmatmul.bf16.gmra.mxu0 %v450
  %v608 = vpop.f32.mrf.mxu0
  %v609 = vadd.f32 0.0, %v608
  %v610 = vpop.f32.mrf.mxu0
  %v611 = vadd.f32 0.0, %v610
  %612 = vmatmul.bf16.gmra.mxu0 %v453
  %v613 = vpop.f32.mrf.mxu0
  %v614 = vadd.f32 0.0, %v613
  %v615 = vpop.f32.mrf.mxu0
  %v616 = vadd.f32 0.0, %v615
  %617 = vmatmul.bf16.gmra.mxu0 %v456
  %v618 = vpop.f32.mrf.mxu0
  %v619 = vadd.f32 0.0, %v618
  %v620 = vpop.f32.mrf.mxu0
  %v621 = vadd.f32 0.0, %v620
  %622 = vmatmul.bf16.gmra.mxu0 %v459
  %v623 = vpop.f32.mrf.mxu0
  %v624 = vadd.f32 0.0, %v623
  %v625 = vpop.f32.mrf.mxu0
  %v626 = vadd.f32 0.0, %v625
  %627 = vmatmul.bf16.gmra.mxu0 %v462
  %v628 = vpop.f32.mrf.mxu0
  %v629 = vadd.f32 0.0, %v628
  %v630 = vpop.f32.mrf.mxu0
  %v631 = vadd.f32 0.0, %v630
  %632 = vmatmul.bf16.gmra.mxu0 %v465
  %v633 = vpop.f32.mrf.mxu0
  %v634 = vadd.f32 0.0, %v633
  %v635 = vpop.f32.mrf.mxu0
  %v636 = vadd.f32 0.0, %v635
  %637 = vmatmul.bf16.gmra.mxu0 %v468
  %v638 = vpop.f32.mrf.mxu0
  %v639 = vadd.f32 0.0, %v638
  %v640 = vpop.f32.mrf.mxu0
  %v641 = vadd.f32 0.0, %v640
  %642 = vdwg.mxu0
  %v643 = vadd.f32 %v84, %v484
  %v644 = vadd.f32 %v85, %v486
  %v645 = vadd.f32 %v86, %v489
  %v646 = vadd.f32 %v87, %v491
  %v647 = vadd.f32 %v88, %v494
  %v648 = vadd.f32 %v89, %v496
  %v649 = vadd.f32 %v90, %v499
  %v650 = vadd.f32 %v91, %v501
  %v651 = vadd.f32 %v92, %v504
  %v652 = vadd.f32 %v93, %v506
  %v653 = vadd.f32 %v94, %v509
  %v654 = vadd.f32 %v95, %v511
  %v655 = vadd.f32 %v96, %v514
  %v656 = vadd.f32 %v97, %v516
  %v657 = vadd.f32 %v98, %v519
  %v658 = vadd.f32 %v99, %v521
  %v659 = vadd.f32 %v100, %v524
  %v660 = vadd.f32 %v101, %v526
  %v661 = vadd.f32 %v102, %v529
  %v662 = vadd.f32 %v103, %v531
  %v663 = vadd.f32 %v104, %v534
  %v664 = vadd.f32 %v105, %v536
  %v665 = vadd.f32 %v106, %v539
  %v666 = vadd.f32 %v107, %v541
  %v667 = vadd.f32 %v108, %v544
  %v668 = vadd.f32 %v109, %v546
  %v669 = vadd.f32 %v110, %v549
  %v670 = vadd.f32 %v111, %v551
  %v671 = vadd.f32 %v112, %v554
  %v672 = vadd.f32 %v113, %v556
  %v673 = vadd.f32 %v114, %v559
  %v674 = vadd.f32 %v115, %v561
  %v675 = vadd.f32 %v116, %v564
  %v676 = vadd.f32 %v117, %v566
  %v677 = vadd.f32 %v118, %v569
  %v678 = vadd.f32 %v119, %v571
  %v679 = vadd.f32 %v120, %v574
  %v680 = vadd.f32 %v121, %v576
  %v681 = vadd.f32 %v122, %v579
  %v682 = vadd.f32 %v123, %v581
  %v683 = vadd.f32 %v124, %v584
  %v684 = vadd.f32 %v125, %v586
  %v685 = vadd.f32 %v126, %v589
  %v686 = vadd.f32 %v127, %v591
  %v687 = vadd.f32 %v128, %v594
  %v688 = vadd.f32 %v129, %v596
  %v689 = vadd.f32 %v130, %v599
  %v690 = vadd.f32 %v131, %v601
  %v691 = vadd.f32 %v132, %v604
  %v692 = vadd.f32 %v133, %v606
  %v693 = vadd.f32 %v134, %v609
  %v694 = vadd.f32 %v135, %v611
  %v695 = vadd.f32 %v136, %v614
  %v696 = vadd.f32 %v137, %v616
  %v697 = vadd.f32 %v138, %v619
  %v698 = vadd.f32 %v139, %v621
  %v699 = vadd.f32 %v140, %v624
  %v700 = vadd.f32 %v141, %v626
  %v701 = vadd.f32 %v142, %v629
  %v702 = vadd.f32 %v143, %v631
  %v703 = vadd.f32 %v144, %v634
  %v704 = vadd.f32 %v145, %v636
  %v705 = vadd.f32 %v146, %v639
  %v706 = vadd.f32 %v147, %v641
  %707 = vst.msk [vmem:[#allocation2] sm:$0xff] %vm373, %v643
  %708 = vst.msk [vmem:[#allocation2 + $0x8] sm:$0xff] %vm373, %v644
  %709 = vst.msk [vmem:[#allocation2 + $0x10] sm:$0xff] %vm373, %v645
  %710 = vst.msk [vmem:[#allocation2 + $0x18] sm:$0xff] %vm373, %v646
  %711 = vst.msk [vmem:[#allocation2 + $0x20] sm:$0xff] %vm373, %v647
  %712 = vst.msk [vmem:[#allocation2 + $0x28] sm:$0xff] %vm373, %v648
  %713 = vst.msk [vmem:[#allocation2 + $0x30] sm:$0xff] %vm373, %v649
  %714 = vst.msk [vmem:[#allocation2 + $0x38] sm:$0xff] %vm373, %v650
  %715 = vst.msk [vmem:[#allocation2 + $0x40] sm:$0xff] %vm373, %v651
  %716 = vst.msk [vmem:[#allocation2 + $0x48] sm:$0xff] %vm373, %v652
  %717 = vst.msk [vmem:[#allocation2 + $0x50] sm:$0xff] %vm373, %v653
  %718 = vst.msk [vmem:[#allocation2 + $0x58] sm:$0xff] %vm373, %v654
  %719 = vst.msk [vmem:[#allocation2 + $0x60] sm:$0xff] %vm373, %v655
  %720 = vst.msk [vmem:[#allocation2 + $0x68] sm:$0xff] %vm373, %v656
  %721 = vst.msk [vmem:[#allocation2 + $0x70] sm:$0xff] %vm373, %v657
  %722 = vst.msk [vmem:[#allocation2 + $0x78] sm:$0xff] %vm373, %v658
  %723 = vst.msk [vmem:[#allocation2 + $0x80] sm:$0xff] %vm373, %v659
  %724 = vst.msk [vmem:[#allocation2 + $0x88] sm:$0xff] %vm373, %v660
  %725 = vst.msk [vmem:[#allocation2 + $0x90] sm:$0xff] %vm373, %v661
  %726 = vst.msk [vmem:[#allocation2 + $0x98] sm:$0xff] %vm373, %v662
  %727 = vst.msk [vmem:[#allocation2 + $0xa0] sm:$0xff] %vm373, %v663
  %728 = vst.msk [vmem:[#allocation2 + $0xa8] sm:$0xff] %vm373, %v664
  %729 = vst.msk [vmem:[#allocation2 + $0xb0] sm:$0xff] %vm373, %v665
  %730 = vst.msk [vmem:[#allocation2 + $0xb8] sm:$0xff] %vm373, %v666
  %731 = vst.msk [vmem:[#allocation2 + $0xc0] sm:$0xff] %vm373, %v667
  %732 = vst.msk [vmem:[#allocation2 + $0xc8] sm:$0xff] %vm373, %v668
  %733 = vst.msk [vmem:[#allocation2 + $0xd0] sm:$0xff] %vm373, %v669
  %734 = vst.msk [vmem:[#allocation2 + $0xd8] sm:$0xff] %vm373, %v670
  %735 = vst.msk [vmem:[#allocation2 + $0xe0] sm:$0xff] %vm373, %v671
  %736 = vst.msk [vmem:[#allocation2 + $0xe8] sm:$0xff] %vm373, %v672
  %737 = vst.msk [vmem:[#allocation2 + $0xf0] sm:$0xff] %vm373, %v673
  %738 = vst.msk [vmem:[#allocation2 + $0xf8] sm:$0xff] %vm373, %v674
  %739 = vst.msk [vmem:[#allocation2 + $0x100] sm:$0xff] %vm373, %v675
  %740 = vst.msk [vmem:[#allocation2 + $0x108] sm:$0xff] %vm373, %v676
  %741 = vst.msk [vmem:[#allocation2 + $0x110] sm:$0xff] %vm373, %v677
  %742 = vst.msk [vmem:[#allocation2 + $0x118] sm:$0xff] %vm373, %v678
  %743 = vst.msk [vmem:[#allocation2 + $0x120] sm:$0xff] %vm373, %v679
  %744 = vst.msk [vmem:[#allocation2 + $0x128] sm:$0xff] %vm373, %v680
  %745 = vst.msk [vmem:[#allocation2 + $0x130] sm:$0xff] %vm373, %v681
  %746 = vst.msk [vmem:[#allocation2 + $0x138] sm:$0xff] %vm373, %v682
  %747 = vst.msk [vmem:[#allocation2 + $0x140] sm:$0xff] %vm373, %v683
  %748 = vst.msk [vmem:[#allocation2 + $0x148] sm:$0xff] %vm373, %v684
  %749 = vst.msk [vmem:[#allocation2 + $0x150] sm:$0xff] %vm373, %v685
  %750 = vst.msk [vmem:[#allocation2 + $0x158] sm:$0xff] %vm373, %v686
  %751 = vst.msk [vmem:[#allocation2 + $0x160] sm:$0xff] %vm373, %v687
  %752 = vst.msk [vmem:[#allocation2 + $0x168] sm:$0xff] %vm373, %v688
  %753 = vst.msk [vmem:[#allocation2 + $0x170] sm:$0xff] %vm373, %v689
  %754 = vst.msk [vmem:[#allocation2 + $0x178] sm:$0xff] %vm373, %v690
  %755 = vst.msk [vmem:[#allocation2 + $0x180] sm:$0xff] %vm373, %v691
  %756 = vst.msk [vmem:[#allocation2 + $0x188] sm:$0xff] %vm373, %v692
  %757 = vst.msk [vmem:[#allocation2 + $0x190] sm:$0xff] %vm373, %v693
  %758 = vst.msk [vmem:[#allocation2 + $0x198] sm:$0xff] %vm373, %v694
  %759 = vst.msk [vmem:[#allocation2 + $0x1a0] sm:$0xff] %vm373, %v695
  %760 = vst.msk [vmem:[#allocation2 + $0x1a8] sm:$0xff] %vm373, %v696
  %761 = vst.msk [vmem:[#allocation2 + $0x1b0] sm:$0xff] %vm373, %v697
  %762 = vst.msk [vmem:[#allocation2 + $0x1b8] sm:$0xff] %vm373, %v698
  %763 = vst.msk [vmem:[#allocation2 + $0x1c0] sm:$0xff] %vm373, %v699
  %764 = vst.msk [vmem:[#allocation2 + $0x1c8] sm:$0xff] %vm373, %v700
  %765 = vst.msk [vmem:[#allocation2 + $0x1d0] sm:$0xff] %vm373, %v701
  %766 = vst.msk [vmem:[#allocation2 + $0x1d8] sm:$0xff] %vm373, %v702
  %767 = vst.msk [vmem:[#allocation2 + $0x1e0] sm:$0xff] %vm373, %v703
  %768 = vst.msk [vmem:[#allocation2 + $0x1e8] sm:$0xff] %vm373, %v704
  %769 = vst.msk [vmem:[#allocation2 + $0x1f0] sm:$0xff] %vm373, %v705
  %770 = vst.msk [vmem:[#allocation2 + $0x1f8] sm:$0xff] %vm373, %v706
  // Predicated region
  $region18: #{tpu_custom_call.1} parent=0 // pred_check
    %p771 = pneg %p15
  $region19: #{tpu_custom_call.1} parent=0 // pred_check_branch
    %773 = sbr.rel (%p771) target = $region21
  $region20: #{tpu_custom_call.1} parent=0 // pred_region
    %v774 = vld [vmem:[#allocation2] sm:$0xff]
    %v775 = vld [vmem:[#allocation2 + $0x8] sm:$0xff]
    %v776 = vld [vmem:[#allocation2 + $0x10] sm:$0xff]
    %v777 = vld [vmem:[#allocation2 + $0x18] sm:$0xff]
    %v778 = vld [vmem:[#allocation2 + $0x20] sm:$0xff]
    %v779 = vld [vmem:[#allocation2 + $0x28] sm:$0xff]
    %v780 = vld [vmem:[#allocation2 + $0x30] sm:$0xff]
    %v781 = vld [vmem:[#allocation2 + $0x38] sm:$0xff]
    %v782 = vld [vmem:[#allocation2 + $0x40] sm:$0xff]
    %v783 = vld [vmem:[#allocation2 + $0x48] sm:$0xff]
    %v784 = vld [vmem:[#allocation2 + $0x50] sm:$0xff]
    %v785 = vld [vmem:[#allocation2 + $0x58] sm:$0xff]
    %v786 = vld [vmem:[#allocation2 + $0x60] sm:$0xff]
    %v787 = vld [vmem:[#allocation2 + $0x68] sm:$0xff]
    %v788 = vld [vmem:[#allocation2 + $0x70] sm:$0xff]
    %v789 = vld [vmem:[#allocation2 + $0x78] sm:$0xff]
    %v790 = vld [vmem:[#allocation2 + $0x80] sm:$0xff]
    %v791 = vld [vmem:[#allocation2 + $0x88] sm:$0xff]
    %v792 = vld [vmem:[#allocation2 + $0x90] sm:$0xff]
    %v793 = vld [vmem:[#allocation2 + $0x98] sm:$0xff]
    %v794 = vld [vmem:[#allocation2 + $0xa0] sm:$0xff]
    %v795 = vld [vmem:[#allocation2 + $0xa8] sm:$0xff]
    %v796 = vld [vmem:[#allocation2 + $0xb0] sm:$0xff]
    %v797 = vld [vmem:[#allocation2 + $0xb8] sm:$0xff]
    %v798 = vld [vmem:[#allocation2 + $0xc0] sm:$0xff]
    %v799 = vld [vmem:[#allocation2 + $0xc8] sm:$0xff]
    %v800 = vld [vmem:[#allocation2 + $0xd0] sm:$0xff]
    %v801 = vld [vmem:[#allocation2 + $0xd8] sm:$0xff]
    %v802 = vld [vmem:[#allocation2 + $0xe0] sm:$0xff]
    %v803 = vld [vmem:[#allocation2 + $0xe8] sm:$0xff]
    %v804 = vld [vmem:[#allocation2 + $0xf0] sm:$0xff]
    %v805 = vld [vmem:[#allocation2 + $0xf8] sm:$0xff]
    %v806 = vld [vmem:[#allocation2 + $0x100] sm:$0xff]
    %v807 = vld [vmem:[#allocation2 + $0x108] sm:$0xff]
    %v808 = vld [vmem:[#allocation2 + $0x110] sm:$0xff]
    %v809 = vld [vmem:[#allocation2 + $0x118] sm:$0xff]
    %v810 = vld [vmem:[#allocation2 + $0x120] sm:$0xff]
    %v811 = vld [vmem:[#allocation2 + $0x128] sm:$0xff]
    %v812 = vld [vmem:[#allocation2 + $0x130] sm:$0xff]
    %v813 = vld [vmem:[#allocation2 + $0x138] sm:$0xff]
    %v814 = vld [vmem:[#allocation2 + $0x140] sm:$0xff]
    %v815 = vld [vmem:[#allocation2 + $0x148] sm:$0xff]
    %v816 = vld [vmem:[#allocation2 + $0x150] sm:$0xff]
    %v817 = vld [vmem:[#allocation2 + $0x158] sm:$0xff]
    %v818 = vld [vmem:[#allocation2 + $0x160] sm:$0xff]
    %v819 = vld [vmem:[#allocation2 + $0x168] sm:$0xff]
    %v820 = vld [vmem:[#allocation2 + $0x170] sm:$0xff]
    %v821 = vld [vmem:[#allocation2 + $0x178] sm:$0xff]
    %v822 = vld [vmem:[#allocation2 + $0x180] sm:$0xff]
    %v823 = vld [vmem:[#allocation2 + $0x188] sm:$0xff]
    %v824 = vld [vmem:[#allocation2 + $0x190] sm:$0xff]
    %v825 = vld [vmem:[#allocation2 + $0x198] sm:$0xff]
    %v826 = vld [vmem:[#allocation2 + $0x1a0] sm:$0xff]
    %v827 = vld [vmem:[#allocation2 + $0x1a8] sm:$0xff]
    %v828 = vld [vmem:[#allocation2 + $0x1b0] sm:$0xff]
    %v829 = vld [vmem:[#allocation2 + $0x1b8] sm:$0xff]
    %v830 = vld [vmem:[#allocation2 + $0x1c0] sm:$0xff]
    %v831 = vld [vmem:[#allocation2 + $0x1c8] sm:$0xff]
    %v832 = vld [vmem:[#allocation2 + $0x1d0] sm:$0xff]
    %v833 = vld [vmem:[#allocation2 + $0x1d8] sm:$0xff]
    %v834 = vld [vmem:[#allocation2 + $0x1e0] sm:$0xff]
    %v835 = vld [vmem:[#allocation2 + $0x1e8] sm:$0xff]
    %v836 = vld [vmem:[#allocation2 + $0x1f0] sm:$0xff]
    %v837 = vld [vmem:[#allocation2 + $0x1f8] sm:$0xff]
    %v838 = vld [vmem:[%s2] sm:$0x1]
    %v840 = vperm.slane %v838, 0
    %v842 = vadd.f32 %v774, %v840
    %v843 = vadd.f32 %v775, %v840
    %v844 = vadd.f32 %v776, %v840
    %v845 = vadd.f32 %v777, %v840
    %v846 = vadd.f32 %v778, %v840
    %v847 = vadd.f32 %v779, %v840
    %v848 = vadd.f32 %v780, %v840
    %v849 = vadd.f32 %v781, %v840
    %v850 = vadd.f32 %v782, %v840
    %v851 = vadd.f32 %v783, %v840
    %v852 = vadd.f32 %v784, %v840
    %v853 = vadd.f32 %v785, %v840
    %v854 = vadd.f32 %v786, %v840
    %v855 = vadd.f32 %v787, %v840
    %v856 = vadd.f32 %v788, %v840
    %v857 = vadd.f32 %v789, %v840
    %v858 = vadd.f32 %v790, %v840
    %v859 = vadd.f32 %v791, %v840
    %v860 = vadd.f32 %v792, %v840
    %v861 = vadd.f32 %v793, %v840
    %v862 = vadd.f32 %v794, %v840
    %v863 = vadd.f32 %v795, %v840
    %v864 = vadd.f32 %v796, %v840
    %v865 = vadd.f32 %v797, %v840
    %v866 = vadd.f32 %v798, %v840
    %v867 = vadd.f32 %v799, %v840
    %v868 = vadd.f32 %v800, %v840
    %v869 = vadd.f32 %v801, %v840
    %v870 = vadd.f32 %v802, %v840
    %v871 = vadd.f32 %v803, %v840
    %v872 = vadd.f32 %v804, %v840
    %v873 = vadd.f32 %v805, %v840
    %v874 = vadd.f32 %v806, %v840
    %v875 = vadd.f32 %v807, %v840
    %v876 = vadd.f32 %v808, %v840
    %v877 = vadd.f32 %v809, %v840
    %v878 = vadd.f32 %v810, %v840
    %v879 = vadd.f32 %v811, %v840
    %v880 = vadd.f32 %v812, %v840
    %v881 = vadd.f32 %v813, %v840
    %v882 = vadd.f32 %v814, %v840
    %v883 = vadd.f32 %v815, %v840
    %v884 = vadd.f32 %v816, %v840
    %v885 = vadd.f32 %v817, %v840
    %v886 = vadd.f32 %v818, %v840
    %v887 = vadd.f32 %v819, %v840
    %v888 = vadd.f32 %v820, %v840
    %v889 = vadd.f32 %v821, %v840
    %v890 = vadd.f32 %v822, %v840
    %v891 = vadd.f32 %v823, %v840
    %v892 = vadd.f32 %v824, %v840
    %v893 = vadd.f32 %v825, %v840
    %v894 = vadd.f32 %v826, %v840
    %v895 = vadd.f32 %v827, %v840
    %v896 = vadd.f32 %v828, %v840
    %v897 = vadd.f32 %v829, %v840
    %v898 = vadd.f32 %v830, %v840
    %v899 = vadd.f32 %v831, %v840
    %v900 = vadd.f32 %v832, %v840
    %v901 = vadd.f32 %v833, %v840
    %v902 = vadd.f32 %v834, %v840
    %v903 = vadd.f32 %v835, %v840
    %v904 = vadd.f32 %v836, %v840
    %v905 = vadd.f32 %v837, %v840
    %v906 = vmax.f32 %v842, 0.0
    %v907 = vmax.f32 %v843, 0.0
    %v908 = vmax.f32 %v844, 0.0
    %v909 = vmax.f32 %v845, 0.0
    %v910 = vmax.f32 %v846, 0.0
    %v911 = vmax.f32 %v847, 0.0
    %v912 = vmax.f32 %v848, 0.0
    %v913 = vmax.f32 %v849, 0.0
    %v914 = vmax.f32 %v850, 0.0
    %v915 = vmax.f32 %v851, 0.0
    %v916 = vmax.f32 %v852, 0.0
    %v917 = vmax.f32 %v853, 0.0
    %v918 = vmax.f32 %v854, 0.0
    %v919 = vmax.f32 %v855, 0.0
    %v920 = vmax.f32 %v856, 0.0
    %v921 = vmax.f32 %v857, 0.0
    %v922 = vmax.f32 %v858, 0.0
    %v923 = vmax.f32 %v859, 0.0
    %v924 = vmax.f32 %v860, 0.0
    %v925 = vmax.f32 %v861, 0.0
    %v926 = vmax.f32 %v862, 0.0
    %v927 = vmax.f32 %v863, 0.0
    %v928 = vmax.f32 %v864, 0.0
    %v929 = vmax.f32 %v865, 0.0
    %v930 = vmax.f32 %v866, 0.0
    %v931 = vmax.f32 %v867, 0.0
    %v932 = vmax.f32 %v868, 0.0
    %v933 = vmax.f32 %v869, 0.0
    %v934 = vmax.f32 %v870, 0.0
    %v935 = vmax.f32 %v871, 0.0
    %v936 = vmax.f32 %v872, 0.0
    %v937 = vmax.f32 %v873, 0.0
    %v938 = vmax.f32 %v874, 0.0
    %v939 = vmax.f32 %v875, 0.0
    %v940 = vmax.f32 %v876, 0.0
    %v941 = vmax.f32 %v877, 0.0
    %v942 = vmax.f32 %v878, 0.0
    %v943 = vmax.f32 %v879, 0.0
    %v944 = vmax.f32 %v880, 0.0
    %v945 = vmax.f32 %v881, 0.0
    %v946 = vmax.f32 %v882, 0.0
    %v947 = vmax.f32 %v883, 0.0
    %v948 = vmax.f32 %v884, 0.0
    %v949 = vmax.f32 %v885, 0.0
    %v950 = vmax.f32 %v886, 0.0
    %v951 = vmax.f32 %v887, 0.0
    %v952 = vmax.f32 %v888, 0.0
    %v953 = vmax.f32 %v889, 0.0
    %v954 = vmax.f32 %v890, 0.0
    %v955 = vmax.f32 %v891, 0.0
    %v956 = vmax.f32 %v892, 0.0
    %v957 = vmax.f32 %v893, 0.0
    %v958 = vmax.f32 %v894, 0.0
    %v959 = vmax.f32 %v895, 0.0
    %v960 = vmax.f32 %v896, 0.0
    %v961 = vmax.f32 %v897, 0.0
    %v962 = vmax.f32 %v898, 0.0
    %v963 = vmax.f32 %v899, 0.0
    %v964 = vmax.f32 %v900, 0.0
    %v965 = vmax.f32 %v901, 0.0
    %v966 = vmax.f32 %v902, 0.0
    %v967 = vmax.f32 %v903, 0.0
    %v968 = vmax.f32 %v904, 0.0
    %v969 = vmax.f32 %v905, 0.0
    %v970 = vpack.c.bf16 %v906, %v906
    %v971 = vpack.c.bf16 %v907, %v907
    %v972 = vpack.c.bf16 %v908, %v908
    %v973 = vpack.c.bf16 %v909, %v909
    %v974 = vpack.c.bf16 %v910, %v910
    %v975 = vpack.c.bf16 %v911, %v911
    %v976 = vpack.c.bf16 %v912, %v912
    %v977 = vpack.c.bf16 %v913, %v913
    %v978 = vpack.c.bf16 %v914, %v914
    %v979 = vpack.c.bf16 %v915, %v915
    %v980 = vpack.c.bf16 %v916, %v916
    %v981 = vpack.c.bf16 %v917, %v917
    %v982 = vpack.c.bf16 %v918, %v918
    %v983 = vpack.c.bf16 %v919, %v919
    %v984 = vpack.c.bf16 %v920, %v920
    %v985 = vpack.c.bf16 %v921, %v921
    %v986 = vpack.c.bf16 %v922, %v922
    %v987 = vpack.c.bf16 %v923, %v923
    %v988 = vpack.c.bf16 %v924, %v924
    %v989 = vpack.c.bf16 %v925, %v925
    %v990 = vpack.c.bf16 %v926, %v926
    %v991 = vpack.c.bf16 %v927, %v927
    %v992 = vpack.c.bf16 %v928, %v928
    %v993 = vpack.c.bf16 %v929, %v929
    %v994 = vpack.c.bf16 %v930, %v930
    %v995 = vpack.c.bf16 %v931, %v931
    %v996 = vpack.c.bf16 %v932, %v932
    %v997 = vpack.c.bf16 %v933, %v933
    %v998 = vpack.c.bf16 %v934, %v934
    %v999 = vpack.c.bf16 %v935, %v935
    %v1000 = vpack.c.bf16 %v936, %v936
    %v1001 = vpack.c.bf16 %v937, %v937
    %v1002 = vpack.c.bf16 %v938, %v938
    %v1003 = vpack.c.bf16 %v939, %v939
    %v1004 = vpack.c.bf16 %v940, %v940
    %v1005 = vpack.c.bf16 %v941, %v941
    %v1006 = vpack.c.bf16 %v942, %v942
    %v1007 = vpack.c.bf16 %v943, %v943
    %v1008 = vpack.c.bf16 %v944, %v944
    %v1009 = vpack.c.bf16 %v945, %v945
    %v1010 = vpack.c.bf16 %v946, %v946
    %v1011 = vpack.c.bf16 %v947, %v947
    %v1012 = vpack.c.bf16 %v948, %v948
    %v1013 = vpack.c.bf16 %v949, %v949
    %v1014 = vpack.c.bf16 %v950, %v950
    %v1015 = vpack.c.bf16 %v951, %v951
    %v1016 = vpack.c.bf16 %v952, %v952
    %v1017 = vpack.c.bf16 %v953, %v953
    %v1018 = vpack.c.bf16 %v954, %v954
    %v1019 = vpack.c.bf16 %v955, %v955
    %v1020 = vpack.c.bf16 %v956, %v956
    %v1021 = vpack.c.bf16 %v957, %v957
    %v1022 = vpack.c.bf16 %v958, %v958
    %v1023 = vpack.c.bf16 %v959, %v959
    %v1024 = vpack.c.bf16 %v960, %v960
    %v1025 = vpack.c.bf16 %v961, %v961
    %v1026 = vpack.c.bf16 %v962, %v962
    %v1027 = vpack.c.bf16 %v963, %v963
    %v1028 = vpack.c.bf16 %v964, %v964
    %v1029 = vpack.c.bf16 %v965, %v965
    %v1030 = vpack.c.bf16 %v966, %v966
    %v1031 = vpack.c.bf16 %v967, %v967
    %v1032 = vpack.c.bf16 %v968, %v968
    %v1033 = vpack.c.bf16 %v969, %v969
    %vm1034 = vcmask 27648
    %1035 = vst.msk [vmem:[%s3] sm:$0xf] %vm1034, %v970
    %1036 = vst.msk [vmem:[%s3 + $0x4] sm:$0xf] %vm1034, %v971
    %1037 = vst.msk [vmem:[%s3 + $0x8] sm:$0xf] %vm1034, %v972
    %1038 = vst.msk [vmem:[%s3 + $0xc] sm:$0xf] %vm1034, %v973
    %1039 = vst.msk [vmem:[%s3 + $0x10] sm:$0xf] %vm1034, %v974
    %1040 = vst.msk [vmem:[%s3 + $0x14] sm:$0xf] %vm1034, %v975
    %1041 = vst.msk [vmem:[%s3 + $0x18] sm:$0xf] %vm1034, %v976
    %1042 = vst.msk [vmem:[%s3 + $0x1c] sm:$0xf] %vm1034, %v977
    %1043 = vst.msk [vmem:[%s3 + $0x20] sm:$0xf] %vm1034, %v978
    %1044 = vst.msk [vmem:[%s3 + $0x24] sm:$0xf] %vm1034, %v979
    %1045 = vst.msk [vmem:[%s3 + $0x28] sm:$0xf] %vm1034, %v980
    %1046 = vst.msk [vmem:[%s3 + $0x2c] sm:$0xf] %vm1034, %v981
    %1047 = vst.msk [vmem:[%s3 + $0x30] sm:$0xf] %vm1034, %v982
    %1048 = vst.msk [vmem:[%s3 + $0x34] sm:$0xf] %vm1034, %v983
    %1049 = vst.msk [vmem:[%s3 + $0x38] sm:$0xf] %vm1034, %v984
    %1050 = vst.msk [vmem:[%s3 + $0x3c] sm:$0xf] %vm1034, %v985
    %1051 = vst.msk [vmem:[%s3 + $0x40] sm:$0xf] %vm1034, %v986
    %1052 = vst.msk [vmem:[%s3 + $0x44] sm:$0xf] %vm1034, %v987
    %1053 = vst.msk [vmem:[%s3 + $0x48] sm:$0xf] %vm1034, %v988
    %1054 = vst.msk [vmem:[%s3 + $0x4c] sm:$0xf] %vm1034, %v989
    %1055 = vst.msk [vmem:[%s3 + $0x50] sm:$0xf] %vm1034, %v990
    %1056 = vst.msk [vmem:[%s3 + $0x54] sm:$0xf] %vm1034, %v991
    %1057 = vst.msk [vmem:[%s3 + $0x58] sm:$0xf] %vm1034, %v992
    %1058 = vst.msk [vmem:[%s3 + $0x5c] sm:$0xf] %vm1034, %v993
    %1059 = vst.msk [vmem:[%s3 + $0x60] sm:$0xf] %vm1034, %v994
    %1060 = vst.msk [vmem:[%s3 + $0x64] sm:$0xf] %vm1034, %v995
    %1061 = vst.msk [vmem:[%s3 + $0x68] sm:$0xf] %vm1034, %v996
    %1062 = vst.msk [vmem:[%s3 + $0x6c] sm:$0xf] %vm1034, %v997
    %1063 = vst.msk [vmem:[%s3 + $0x70] sm:$0xf] %vm1034, %v998
    %1064 = vst.msk [vmem:[%s3 + $0x74] sm:$0xf] %vm1034, %v999
    %1065 = vst.msk [vmem:[%s3 + $0x78] sm:$0xf] %vm1034, %v1000
    %1066 = vst.msk [vmem:[%s3 + $0x7c] sm:$0xf] %vm1034, %v1001
    %1067 = vst.msk [vmem:[%s3 + $0x80] sm:$0xf] %vm1034, %v1002
    %1068 = vst.msk [vmem:[%s3 + $0x84] sm:$0xf] %vm1034, %v1003
    %1069 = vst.msk [vmem:[%s3 + $0x88] sm:$0xf] %vm1034, %v1004
    %1070 = vst.msk [vmem:[%s3 + $0x8c] sm:$0xf] %vm1034, %v1005
    %1071 = vst.msk [vmem:[%s3 + $0x90] sm:$0xf] %vm1034, %v1006
    %1072 = vst.msk [vmem:[%s3 + $0x94] sm:$0xf] %vm1034, %v1007
    %1073 = vst.msk [vmem:[%s3 + $0x98] sm:$0xf] %vm1034, %v1008
    %1074 = vst.msk [vmem:[%s3 + $0x9c] sm:$0xf] %vm1034, %v1009
    %1075 = vst.msk [vmem:[%s3 + $0xa0] sm:$0xf] %vm1034, %v1010
    %1076 = vst.msk [vmem:[%s3 + $0xa4] sm:$0xf] %vm1034, %v1011
    %1077 = vst.msk [vmem:[%s3 + $0xa8] sm:$0xf] %vm1034, %v1012
    %1078 = vst.msk [vmem:[%s3 + $0xac] sm:$0xf] %vm1034, %v1013
    %1079 = vst.msk [vmem:[%s3 + $0xb0] sm:$0xf] %vm1034, %v1014
    %1080 = vst.msk [vmem:[%s3 + $0xb4] sm:$0xf] %vm1034, %v1015
    %1081 = vst.msk [vmem:[%s3 + $0xb8] sm:$0xf] %vm1034, %v1016
    %1082 = vst.msk [vmem:[%s3 + $0xbc] sm:$0xf] %vm1034, %v1017
    %1083 = vst.msk [vmem:[%s3 + $0xc0] sm:$0xf] %vm1034, %v1018
    %1084 = vst.msk [vmem:[%s3 + $0xc4] sm:$0xf] %vm1034, %v1019
    %1085 = vst.msk [vmem:[%s3 + $0xc8] sm:$0xf] %vm1034, %v1020
    %1086 = vst.msk [vmem:[%s3 + $0xcc] sm:$0xf] %vm1034, %v1021
    %1087 = vst.msk [vmem:[%s3 + $0xd0] sm:$0xf] %vm1034, %v1022
    %1088 = vst.msk [vmem:[%s3 + $0xd4] sm:$0xf] %vm1034, %v1023
    %1089 = vst.msk [vmem:[%s3 + $0xd8] sm:$0xf] %vm1034, %v1024
    %1090 = vst.msk [vmem:[%s3 + $0xdc] sm:$0xf] %vm1034, %v1025
    %1091 = vst.msk [vmem:[%s3 + $0xe0] sm:$0xf] %vm1034, %v1026
    %1092 = vst.msk [vmem:[%s3 + $0xe4] sm:$0xf] %vm1034, %v1027
    %1093 = vst.msk [vmem:[%s3 + $0xe8] sm:$0xf] %vm1034, %v1028
    %1094 = vst.msk [vmem:[%s3 + $0xec] sm:$0xf] %vm1034, %v1029
    %1095 = vst.msk [vmem:[%s3 + $0xf0] sm:$0xf] %vm1034, %v1030
    %1096 = vst.msk [vmem:[%s3 + $0xf4] sm:$0xf] %vm1034, %v1031
    %1097 = vst.msk [vmem:[%s3 + $0xf8] sm:$0xf] %vm1034, %v1032
    %1098 = vst.msk [vmem:[%s3 + $0xfc] sm:$0xf] %vm1034, %v1033
  $region21: #{tpu_custom_call.1} parent=0 // pred_fallthru
    _
  // Predicated region
  $region22: #{tpu_custom_call.1} parent=0 // pred_check
    _
  $region23: #{tpu_custom_call.1} parent=0 // pred_check_branch
    %1100 = sbr.rel (0) target = $region25
  $region24: #{tpu_custom_call.1} parent=0 // pred_region
    _
  $region25: #{tpu_custom_call.1} parent=0 // pred_fallthru
    _
  // Predicated region
  $region26: #{tpu_custom_call.1} parent=0 // pred_check
    _
  $region27: #{tpu_custom_call.1} parent=0 // pred_check_branch
    %1102 = sbr.rel (0) target = $region29
  $region28: #{tpu_custom_call.1} parent=0 // pred_region
    _
  $region29: #{tpu_custom_call.1} parent=0 // pred_fallthru
    _

</llo_original>
